<compile_context>
chip_gen: v6e
topology: v6e:2x2x1
jax: 0.10.0
libtpu: 0.0.40
codegen_flags: <defaults>
</compile_context>

<pallas_src>
import functools

import jax
import jax.numpy as jnp
from jax import lax
from jax.experimental import pallas as pl
from jax.experimental.pallas import tpu as pltpu

LANES = 128   # lane width of a vreg / last-dim alignment
SUB = 8       # sublane alignment for f32


def _round_up(n, m):
    return (n + m - 1) // m * m


def _pad2d(a, rows, cols=LANES):
    """Zero-pad a 2-D array up to (rows, cols)."""
    return jnp.pad(a, ((0, rows - a.shape[0]), (0, cols - a.shape[1])))


def _dnn_kernel(slab_ref, out_ref, *, b_pad, b_real, offs):
    """Single-block kernel: all params + activations live in one VMEM slab."""
    x_off, w1_off, b1_off, w2_off, b2_off, w3_off, b3_off = offs

    # Static slices of the packed slab -> pure views, no extra DMA.
    x  = slab_ref[x_off:x_off + b_pad, :]            # (B_pad, 128), cols>=F are 0
    w1 = slab_ref[w1_off:w1_off + LANES, :]          # (128, 128)
    b1 = slab_ref[b1_off:b1_off + 1, :]              # (1, 128)
    w2 = slab_ref[w2_off:w2_off + LANES, :]          # (128, 128)
    b2 = slab_ref[b2_off:b2_off + 1, :]              # (1, 128)
    w3 = slab_ref[w3_off:w3_off + LANES, :]          # (128, 128)
    b3 = slab_ref[b3_off:b3_off + 1, :]              # (1, 128)

    # Layer 1: Linear + ReLU  (padded cols of w1/b1 are zero -> padded lanes stay 0)
    h1 = jnp.maximum(jnp.dot(x, w1, preferred_element_type=jnp.float32) + b1, 0.0)
    # Layer 2: Linear + ReLU
    h2 = jnp.maximum(jnp.dot(h1, w2, preferred_element_type=jnp.float32) + b2, 0.0)
    # Output layer: Linear
    logits = jnp.dot(h2, w3, preferred_element_type=jnp.float32) + b3   # (B_pad, 128)

    # If the batch was padded, mask the padded rows so they do not pollute the
    # batch-axis softmax (static Python branch: no-op when b_pad == b_real).
    if b_pad != b_real:
        row = lax.broadcasted_iota(jnp.int32, (b_pad, LANES), 0)
        logits = jnp.where(row < b_real, logits, -jnp.inf)

    # log_softmax over dim=0 (the batch axis), exactly as in the PyTorch code.
    # Each column is independent, so the zero-padded class columns are harmless
    # and are sliced away in the wrapper.
    # TODO(synk): dim=0 faithfully matches the module but is likely a bug in the
    # original model (per-class normalization over the batch, not per-example).
    m = jnp.max(logits, axis=0, keepdims=True)                       # (1, 128)
    z = logits - m
    lse = jnp.log(jnp.sum(jnp.exp(z), axis=0, keepdims=True))        # (1, 128)
    out_ref[...] = z - lse                                            # lane-dense store


def dnn_classifier_forward(x, w1, b1, w2, b2, w3, b3):
    """x: (B, input_length) f32.  Weights (in, out); biases (1, out) or (out,)."""
    B, F = x.shape
    H = w1.shape[1]
    C = w3.shape[1]
    assert F <= LANES and H <= LANES and C <= LANES, "toy-size kernel: dims must fit one lane tile"

    b_pad = _round_up(B, SUB)

    # Pack everything into one (rows, 128) slab: every section is sublane-
    # aligned (rows % 8 == 0) and lane-dense (128 cols), padded with zeros.
    sections = [
        _pad2d(x, b_pad),                       # x
        _pad2d(w1, LANES),                      # w1   (contraction dim padded to 128)
        _pad2d(b1.reshape(1, -1), SUB),         # b1
        _pad2d(w2, LANES),                      # w2
        _pad2d(b2.reshape(1, -1), SUB),         # b2
        _pad2d(w3, LANES),                      # w3
        _pad2d(b3.reshape(1, -1), SUB),         # b3
    ]
    offs = []
    off = 0
    for s in sections:
        offs.append(off)
        off += s.shape[0]
    slab = jnp.concatenate(sections, axis=0)    # (off, 128) f32 -> single DMA

    kernel = functools.partial(_dnn_kernel, b_pad=b_pad, b_real=B, offs=tuple(offs))

    out_padded = pl.pallas_call(
        kernel,
        out_shape=jax.ShapeDtypeStruct((b_pad, LANES), jnp.float32),
        in_specs=[pl.BlockSpec(memory_space=pltpu.MemorySpace.VMEM)],
        out_specs=pl.BlockSpec(memory_space=pltpu.MemorySpace.VMEM),
    )(slab)

    # Slice the lane-dense result back to the logical shape.
    return out_padded[:B, :C]


def init_linear_params(key, in_features, out_features):
    """Deterministic init mimicking torch.nn.Linear default (U[-k, k], k=1/sqrt(in))."""
    k = 1.0 / jnp.sqrt(jnp.float32(in_features))
    kw, kb = jax.random.split(key)
    # Stored as (in, out) so the kernel can do x @ W directly.
    w = jax.random.uniform(kw, (in_features, out_features), jnp.float32, -k, k)
    b = jax.random.uniform(kb, (1, out_features), jnp.float32, -k, k)
    return w, b


def reference_forward(x, w1, b1, w2, b2, w3, b3):
    h1 = jnp.maximum(x @ w1 + b1, 0.0)
    h2 = jnp.maximum(h1 @ w2 + b2, 0.0)
    logits = h2 @ w3 + b3
    return jax.nn.log_softmax(logits, axis=0)


if __name__ == "__main__":
    # Shapes consistent with the module: DNNClassifier(input_length=16,
    # nb_classes=4, H=10), batch of 8 examples.
    input_length, H, nb_classes, batch = 16, 10, 4, 8

    key = jax.random.PRNGKey(0)
    kx, k1, k2, k3 = jax.random.split(key, 4)

    x = jax.random.normal(kx, (batch, input_length), jnp.float32)
    w1, b1 = init_linear_params(k1, input_length, H)
    w2, b2 = init_linear_params(k2, H, H)
    w3, b3 = init_linear_params(k3, H, nb_classes)

    out = dnn_classifier_forward(x, w1, b1, w2, b2, w3, b3)
    out = jax.block_until_ready(out)

    # Sanity check against a pure-JAX reference.
    ref = reference_forward(x, w1, b1, w2, b2, w3, b3)
    assert out.shape == (batch, nb_classes)
    assert jnp.allclose(out, ref, atol=1e-5, rtol=1e-5)

    print("KERNEL_OK")
</pallas_src>

<mosaic_0001>
module attributes {stable_mosaic.version = 11 : i64} {
  func.func @_dnn_kernel(%arg0: memref<416x128xf32, #tpu.memory_space<vmem>>, %arg1: memref<8x128xf32, #tpu.memory_space<vmem>>) attributes {dimension_semantics = [], scalar_prefetch = 0 : i64, scratch_operands = 0 : i64, tpu.core_type = #tpu.core_type<tc>} {
    %c0 = arith.constant 0 : index
    %c0_0 = arith.constant 0 : index
    %0 = vector.load %arg0[%c0, %c0_0] : memref<416x128xf32, #tpu.memory_space<vmem>>, vector<8x128xf32>
    %c8 = arith.constant 8 : index
    %c0_1 = arith.constant 0 : index
    %1 = vector.load %arg0[%c8, %c0_1] : memref<416x128xf32, #tpu.memory_space<vmem>>, vector<128x128xf32>
    %c136 = arith.constant 136 : index
    %c0_2 = arith.constant 0 : index
    %2 = vector.load %arg0[%c136, %c0_2] : memref<416x128xf32, #tpu.memory_space<vmem>>, vector<1x128xf32>
    %c144 = arith.constant 144 : index
    %c0_3 = arith.constant 0 : index
    %3 = vector.load %arg0[%c144, %c0_3] : memref<416x128xf32, #tpu.memory_space<vmem>>, vector<128x128xf32>
    %c272 = arith.constant 272 : index
    %c0_4 = arith.constant 0 : index
    %4 = vector.load %arg0[%c272, %c0_4] : memref<416x128xf32, #tpu.memory_space<vmem>>, vector<1x128xf32>
    %c280 = arith.constant 280 : index
    %c0_5 = arith.constant 0 : index
    %5 = vector.load %arg0[%c280, %c0_5] : memref<416x128xf32, #tpu.memory_space<vmem>>, vector<128x128xf32>
    %c408 = arith.constant 408 : index
    %c0_6 = arith.constant 0 : index
    %6 = vector.load %arg0[%c408, %c0_6] : memref<416x128xf32, #tpu.memory_space<vmem>>, vector<1x128xf32>
    %cst = arith.constant dense<0.000000e+00> : vector<8x128xf32>
    %7 = tpu.matmul %0, %1, %cst {dimension_numbers = #tpu.dot_dimension_numbers<[1], [0], [0], [1], [0, 0, 1, 1], [], []>} : vector<8x128xf32>, vector<128x128xf32>, vector<8x128xf32> -> vector<8x128xf32>
    %8 = vector.broadcast %2 : vector<1x128xf32> to vector<8x128xf32>
    %9 = arith.addf %7, %8 : vector<8x128xf32>
    %cst_7 = arith.constant 0.000000e+00 : f32
    %10 = vector.broadcast %cst_7 : f32 to vector<8x128xf32>
    %11 = arith.maximumf %9, %10 : vector<8x128xf32>
    %cst_8 = arith.constant dense<0.000000e+00> : vector<8x128xf32>
    %12 = tpu.matmul %11, %3, %cst_8 {dimension_numbers = #tpu.dot_dimension_numbers<[1], [0], [0], [1], [0, 0, 1, 1], [], []>} : vector<8x128xf32>, vector<128x128xf32>, vector<8x128xf32> -> vector<8x128xf32>
    %13 = vector.broadcast %4 : vector<1x128xf32> to vector<8x128xf32>
    %14 = arith.addf %12, %13 : vector<8x128xf32>
    %cst_9 = arith.constant 0.000000e+00 : f32
    %15 = vector.broadcast %cst_9 : f32 to vector<8x128xf32>
    %16 = arith.maximumf %14, %15 : vector<8x128xf32>
    %cst_10 = arith.constant dense<0.000000e+00> : vector<8x128xf32>
    %17 = tpu.matmul %16, %5, %cst_10 {dimension_numbers = #tpu.dot_dimension_numbers<[1], [0], [0], [1], [0, 0, 1, 1], [], []>} : vector<8x128xf32>, vector<128x128xf32>, vector<8x128xf32> -> vector<8x128xf32>
    %18 = vector.broadcast %6 : vector<1x128xf32> to vector<8x128xf32>
    %19 = arith.addf %17, %18 : vector<8x128xf32>
    %cst_11 = arith.constant dense<0xFF800000> : vector<128xf32>
    %20 = vector.multi_reduction <maximumf>, %19, %cst_11 [0] : vector<8x128xf32> to vector<128xf32>
    %21 = vector.shape_cast %20 : vector<128xf32> to vector<1x128xf32>
    %22 = vector.broadcast %21 : vector<1x128xf32> to vector<8x128xf32>
    %23 = arith.subf %19, %22 : vector<8x128xf32>
    %24 = math.exp %23 : vector<8x128xf32>
    %cst_12 = arith.constant dense<0.000000e+00> : vector<128xf32>
    %25 = vector.multi_reduction <add>, %24, %cst_12 [0] : vector<8x128xf32> to vector<128xf32>
    %26 = vector.shape_cast %25 : vector<128xf32> to vector<1x128xf32>
    %27 = math.log %26 : vector<1x128xf32>
    %28 = vector.broadcast %27 : vector<1x128xf32> to vector<8x128xf32>
    %29 = arith.subf %23, %28 : vector<8x128xf32>
    %c0_13 = arith.constant 0 : index
    %c0_14 = arith.constant 0 : index
    %30 = vector.load %arg1[%c0_13, %c0_14] : memref<8x128xf32, #tpu.memory_space<vmem>>, vector<8x128xf32>
    tpu.vector_store %arg1[%c0_13, %c0_14], %29 {strides = array<i32>} : memref<8x128xf32, #tpu.memory_space<vmem>>, vector<8x128xf32>,
    return
  }
}

</mosaic_0001>

<llo_original>
// kernel: tpu_custom_call.1
$region0: #{tpu_custom_call.1}
  #allocation0 [shape = 'u32[]', space=smem, size = 0x4, offset = 0x4, fixed_abs, tag = 'smem constant byte address 0x4 - core index']
  #allocation1 [shape = 'u32[144,128]{1,0:T(1,128)}', space=vmem, size = 0x12000, scoped, tag = 'internal scratch']
  %s0 = inlined_call_operand.hbm [shape: f32[416,128], index: 0, kind: input, shape index: {}]
  %s1 = inlined_call_operand.hbm [shape: f32[8,128], index: 1, kind: output, shape index: {}]
  %s2 = sld [smem:[#allocation0]]
  $region18: #{tpu_custom_call.1} parent=0
    _
  %s4 = ssub.s32 1, %s2
  %s5 = scalar_select 0, %s4, %s2
  $region1: #{tpu_custom_call.1} parent=0
    #allocation2 [shape = 'u8[212992]{0}', space=vmem, size = 0x34000, scoped, tag = 'input window, operand 0, single buffered']
    #allocation3 [shape = 's32[1]{0}', space=sflag, size = 0x4, scoped, tag = 'scoped memory for tpu_custom_call.1']
    #allocation4 [shape = 's32[1]{0}', space=sflag, size = 0x4, scoped, tag = 'scoped memory for tpu_custom_call.1']
    #allocation5 [shape = 'u8[4096]{0}', space=vmem, size = 0x1000, scoped, tag = 'output window, operand 0, single buffered']
    %6 = vsyncpa [#allocation3], 0
    %7 = vsyncpa [#allocation4], 0
    // Predicated region
    $region2: #{tpu_custom_call.1} parent=1 // pred_check
      _
    $region3: #{tpu_custom_call.1} parent=1 // pred_check_branch
      %9 = sbr.rel (0) target = $region5
    $region4: #{tpu_custom_call.1} parent=1 // pred_region
      %s11 = ssub.s32 6656, 6656
      %12 = vsyncadd [#allocation3], %s11
      %s13 = sshll.u32 [#allocation2], 4
      %s14 = int_to_ptr.vmem [resolvable:$true] %s13
      %19 = dma.hbm_to_vmem [thread:$0]  %s0, 6656, %s14, [#allocation3], 128, 128, 8
    $region5: #{tpu_custom_call.1} parent=1 // pred_fallthru
      _
    // Predicated region
    $region6: #{tpu_custom_call.1} parent=1 // pred_check
      _
    $region7: #{tpu_custom_call.1} parent=1 // pred_check_branch
      %21 = sbr.rel (0) target = $region9
    $region8: #{tpu_custom_call.1} parent=1 // pred_region
      %22 = dma.done [#allocation3], 6656
    $region9: #{tpu_custom_call.1} parent=1 // pred_fallthru
      _
    %v23 = vld [vmem:[#allocation2] sm:$0xff]
    %v24 = vld [vmem:[#allocation2 + $0x8] sm:$0xff]
    %v25 = vld [vmem:[#allocation2 + $0x10] sm:$0xff]
    %v26 = vld [vmem:[#allocation2 + $0x18] sm:$0xff]
    %v27 = vld [vmem:[#allocation2 + $0x20] sm:$0xff]
    %v28 = vld [vmem:[#allocation2 + $0x28] sm:$0xff]
    %v29 = vld [vmem:[#allocation2 + $0x30] sm:$0xff]
    %v30 = vld [vmem:[#allocation2 + $0x38] sm:$0xff]
    %v31 = vld [vmem:[#allocation2 + $0x40] sm:$0xff]
    %v32 = vld [vmem:[#allocation2 + $0x48] sm:$0xff]
    %v33 = vld [vmem:[#allocation2 + $0x50] sm:$0xff]
    %v34 = vld [vmem:[#allocation2 + $0x58] sm:$0xff]
    %v35 = vld [vmem:[#allocation2 + $0x60] sm:$0xff]
    %v36 = vld [vmem:[#allocation2 + $0x68] sm:$0xff]
    %v37 = vld [vmem:[#allocation2 + $0x70] sm:$0xff]
    %v38 = vld [vmem:[#allocation2 + $0x78] sm:$0xff]
    %v39 = vld [vmem:[#allocation2 + $0x80] sm:$0xff]
    %v40 = vld [vmem:[#allocation2 + $0x88] sm:$0x1]
    %v41 = vld [vmem:[#allocation2 + $0x90] sm:$0xff]
    %v42 = vld [vmem:[#allocation2 + $0x98] sm:$0xff]
    %v43 = vld [vmem:[#allocation2 + $0xa0] sm:$0xff]
    %v44 = vld [vmem:[#allocation2 + $0xa8] sm:$0xff]
    %v45 = vld [vmem:[#allocation2 + $0xb0] sm:$0xff]
    %v46 = vld [vmem:[#allocation2 + $0xb8] sm:$0xff]
    %v47 = vld [vmem:[#allocation2 + $0xc0] sm:$0xff]
    %v48 = vld [vmem:[#allocation2 + $0xc8] sm:$0xff]
    %v49 = vld [vmem:[#allocation2 + $0xd0] sm:$0xff]
    %v50 = vld [vmem:[#allocation2 + $0xd8] sm:$0xff]
    %v51 = vld [vmem:[#allocation2 + $0xe0] sm:$0xff]
    %v52 = vld [vmem:[#allocation2 + $0xe8] sm:$0xff]
    %v53 = vld [vmem:[#allocation2 + $0xf0] sm:$0xff]
    %v54 = vld [vmem:[#allocation2 + $0xf8] sm:$0xff]
    %v55 = vld [vmem:[#allocation2 + $0x100] sm:$0xff]
    %v56 = vld [vmem:[#allocation2 + $0x108] sm:$0xff]
    %v57 = vld [vmem:[#allocation2 + $0x110] sm:$0x1]
    %v58 = vld [vmem:[#allocation2 + $0x118] sm:$0xff]
    %v59 = vld [vmem:[#allocation2 + $0x120] sm:$0xff]
    %v60 = vld [vmem:[#allocation2 + $0x128] sm:$0xff]
    %v61 = vld [vmem:[#allocation2 + $0x130] sm:$0xff]
    %v62 = vld [vmem:[#allocation2 + $0x138] sm:$0xff]
    %v63 = vld [vmem:[#allocation2 + $0x140] sm:$0xff]
    %v64 = vld [vmem:[#allocation2 + $0x148] sm:$0xff]
    %v65 = vld [vmem:[#allocation2 + $0x150] sm:$0xff]
    %v66 = vld [vmem:[#allocation2 + $0x158] sm:$0xff]
    %v67 = vld [vmem:[#allocation2 + $0x160] sm:$0xff]
    %v68 = vld [vmem:[#allocation2 + $0x168] sm:$0xff]
    %v69 = vld [vmem:[#allocation2 + $0x170] sm:$0xff]
    %v70 = vld [vmem:[#allocation2 + $0x178] sm:$0xff]
    %v71 = vld [vmem:[#allocation2 + $0x180] sm:$0xff]
    %v72 = vld [vmem:[#allocation2 + $0x188] sm:$0xff]
    %v73 = vld [vmem:[#allocation2 + $0x190] sm:$0xff]
    %v74 = vld [vmem:[#allocation2 + $0x198] sm:$0x1]
    %v75 = vlaneseq
    %v76 = vshrl.u32 %v75, 7
    %v77 = vsub.s32 0, %v76
    %v78 = vrot.slane %v40, %v77
    %79 = vmatprep.subr.mxu0 0.0
    %80 = vmatpush1.msra.mxu0 %v39
    %81 = vmatprep.subr.mxu0 0.0
    %82 = vmatpush1.msra.mxu0 %v38
    %83 = vmatprep.subr.mxu0 0.0
    %84 = vmatpush1.msra.mxu0 %v37
    %85 = vmatprep.subr.mxu0 0.0
    %86 = vmatpush1.msra.mxu0 %v36
    %87 = vmatprep.subr.mxu0 0.0
    %88 = vmatpush1.msra.mxu0 %v35
    %89 = vmatprep.subr.mxu0 0.0
    %90 = vmatpush1.msra.mxu0 %v34
    %91 = vmatprep.subr.mxu0 0.0
    %92 = vmatpush1.msra.mxu0 %v33
    %93 = vmatprep.subr.mxu0 0.0
    %94 = vmatpush1.msra.mxu0 %v32
    %95 = vmatprep.subr.mxu0 0.0
    %96 = vmatpush1.msra.mxu0 %v31
    %97 = vmatprep.subr.mxu0 0.0
    %98 = vmatpush1.msra.mxu0 %v30
    %99 = vmatprep.subr.mxu0 0.0
    %100 = vmatpush1.msra.mxu0 %v29
    %101 = vmatprep.subr.mxu0 0.0
    %102 = vmatpush1.msra.mxu0 %v28
    %103 = vmatprep.subr.mxu0 0.0
    %104 = vmatpush1.msra.mxu0 %v27
    %105 = vmatprep.subr.mxu0 0.0
    %106 = vmatpush1.msra.mxu0 %v26
    %107 = vmatprep.subr.mxu0 0.0
    %108 = vmatpush1.msra.mxu0 %v25
    %109 = vmatprep.subr.mxu0 0.0
    %110 = vmatpush1.msra.mxu0 %v24
    %111 = vmatprep.subr.mxu0 0.0
    %112 = vmatpush2.msra.mxu0 0.0
    %113 = vmatprep.subr.mxu0 0.0
    %114 = vmatpush2.msra.mxu0 0.0
    %115 = vmatprep.subr.mxu0 0.0
    %116 = vmatpush2.msra.mxu0 0.0
    %117 = vmatprep.subr.mxu0 0.0
    %118 = vmatpush2.msra.mxu0 0.0
    %119 = vmatprep.subr.mxu0 0.0
    %120 = vmatpush2.msra.mxu0 0.0
    %121 = vmatprep.subr.mxu0 0.0
    %122 = vmatpush2.msra.mxu0 0.0
    %123 = vmatprep.subr.mxu0 0.0
    %124 = vmatpush2.msra.mxu0 0.0
    %125 = vmatprep.subr.mxu0 0.0
    %126 = vmatpush2.msra.mxu0 0.0
    %127 = vmatprep.subr.mxu0 0.0
    %128 = vmatpush2.msra.mxu0 0.0
    %129 = vmatprep.subr.mxu0 0.0
    %130 = vmatpush2.msra.mxu0 0.0
    %131 = vmatprep.subr.mxu0 0.0
    %132 = vmatpush2.msra.mxu0 0.0
    %133 = vmatprep.subr.mxu0 0.0
    %134 = vmatpush2.msra.mxu0 0.0
    %135 = vmatprep.subr.mxu0 0.0
    %136 = vmatpush2.msra.mxu0 0.0
    %137 = vmatprep.subr.mxu0 0.0
    %138 = vmatpush2.msra.mxu0 0.0
    %139 = vmatprep.subr.mxu0 0.0
    %140 = vmatpush2.msra.mxu0 0.0
    %141 = vmatprep.subr.mxu0 0.0
    %142 = vmatpush2.msra.mxu0 0.0
    %143 = vmatprep.mubr.f32.mxu0 0.0
    %144 = vmatmul.mubr.f32.gmra.mxu0 %v23
    %v145 = vpop.f32.mrf.mxu0
    %v146 = vadd.f32 %v78, %v145
    %v147 = vpop.f32.mrf.mxu0
    %148 = vdwg.mxu0
    %v149 = vmax.f32 %v146, 0.0
    %v150 = vlaneseq
    %v151 = vshrl.u32 %v150, 7
    %v152 = vsub.s32 0, %v151
    %v153 = vrot.slane %v57, %v152
    %154 = vmatprep.subr.mxu0 0.0
    %155 = vmatpush1.msra.mxu0 %v56
    %156 = vmatprep.subr.mxu0 0.0
    %157 = vmatpush1.msra.mxu0 %v55
    %158 = vmatprep.subr.mxu0 0.0
    %159 = vmatpush1.msra.mxu0 %v54
    %160 = vmatprep.subr.mxu0 0.0
    %161 = vmatpush1.msra.mxu0 %v53
    %162 = vmatprep.subr.mxu0 0.0
    %163 = vmatpush1.msra.mxu0 %v52
    %164 = vmatprep.subr.mxu0 0.0
    %165 = vmatpush1.msra.mxu0 %v51
    %166 = vmatprep.subr.mxu0 0.0
    %167 = vmatpush1.msra.mxu0 %v50
    %168 = vmatprep.subr.mxu0 0.0
    %169 = vmatpush1.msra.mxu0 %v49
    %170 = vmatprep.subr.mxu0 0.0
    %171 = vmatpush1.msra.mxu0 %v48
    %172 = vmatprep.subr.mxu0 0.0
    %173 = vmatpush1.msra.mxu0 %v47
    %174 = vmatprep.subr.mxu0 0.0
    %175 = vmatpush1.msra.mxu0 %v46
    %176 = vmatprep.subr.mxu0 0.0
    %177 = vmatpush1.msra.mxu0 %v45
    %178 = vmatprep.subr.mxu0 0.0
    %179 = vmatpush1.msra.mxu0 %v44
    %180 = vmatprep.subr.mxu0 0.0
    %181 = vmatpush1.msra.mxu0 %v43
    %182 = vmatprep.subr.mxu0 0.0
    %183 = vmatpush1.msra.mxu0 %v42
    %184 = vmatprep.subr.mxu0 0.0
    %185 = vmatpush1.msra.mxu0 %v41
    %186 = vmatprep.subr.mxu0 0.0
    %187 = vmatpush2.msra.mxu0 0.0
    %188 = vmatprep.subr.mxu0 0.0
    %189 = vmatpush2.msra.mxu0 0.0
    %190 = vmatprep.subr.mxu0 0.0
    %191 = vmatpush2.msra.mxu0 0.0
    %192 = vmatprep.subr.mxu0 0.0
    %193 = vmatpush2.msra.mxu0 0.0
    %194 = vmatprep.subr.mxu0 0.0
    %195 = vmatpush2.msra.mxu0 0.0
    %196 = vmatprep.subr.mxu0 0.0
    %197 = vmatpush2.msra.mxu0 0.0
    %198 = vmatprep.subr.mxu0 0.0
    %199 = vmatpush2.msra.mxu0 0.0
    %200 = vmatprep.subr.mxu0 0.0
    %201 = vmatpush2.msra.mxu0 0.0
    %202 = vmatprep.subr.mxu0 0.0
    %203 = vmatpush2.msra.mxu0 0.0
    %204 = vmatprep.subr.mxu0 0.0
    %205 = vmatpush2.msra.mxu0 0.0
    %206 = vmatprep.subr.mxu0 0.0
    %207 = vmatpush2.msra.mxu0 0.0
    %208 = vmatprep.subr.mxu0 0.0
    %209 = vmatpush2.msra.mxu0 0.0
    %210 = vmatprep.subr.mxu0 0.0
    %211 = vmatpush2.msra.mxu0 0.0
    %212 = vmatprep.subr.mxu0 0.0
    %213 = vmatpush2.msra.mxu0 0.0
    %214 = vmatprep.subr.mxu0 0.0
    %215 = vmatpush2.msra.mxu0 0.0
    %216 = vmatprep.subr.mxu0 0.0
    %217 = vmatpush2.msra.mxu0 0.0
    %218 = vmatprep.mubr.f32.mxu0 0.0
    %219 = vmatmul.mubr.f32.gmra.mxu0 %v149
    %v220 = vpop.f32.mrf.mxu0
    %v221 = vadd.f32 %v153, %v220
    %v222 = vpop.f32.mrf.mxu0
    %223 = vdwg.mxu0
    %v224 = vmax.f32 %v221, 0.0
    %v225 = vlaneseq
    %v226 = vshrl.u32 %v225, 7
    %v227 = vsub.s32 0, %v226
    %v228 = vrot.slane %v74, %v227
    %229 = vmatprep.subr.mxu0 0.0
    %230 = vmatpush1.msra.mxu0 %v73
    %231 = vmatprep.subr.mxu0 0.0
    %232 = vmatpush1.msra.mxu0 %v72
    %233 = vmatprep.subr.mxu0 0.0
    %234 = vmatpush1.msra.mxu0 %v71
    %235 = vmatprep.subr.mxu0 0.0
    %236 = vmatpush1.msra.mxu0 %v70
    %237 = vmatprep.subr.mxu0 0.0
    %238 = vmatpush1.msra.mxu0 %v69
    %239 = vmatprep.subr.mxu0 0.0
    %240 = vmatpush1.msra.mxu0 %v68
    %241 = vmatprep.subr.mxu0 0.0
    %242 = vmatpush1.msra.mxu0 %v67
    %243 = vmatprep.subr.mxu0 0.0
    %244 = vmatpush1.msra.mxu0 %v66
    %245 = vmatprep.subr.mxu0 0.0
    %246 = vmatpush1.msra.mxu0 %v65
    %247 = vmatprep.subr.mxu0 0.0
    %248 = vmatpush1.msra.mxu0 %v64
    %249 = vmatprep.subr.mxu0 0.0
    %250 = vmatpush1.msra.mxu0 %v63
    %251 = vmatprep.subr.mxu0 0.0
    %252 = vmatpush1.msra.mxu0 %v62
    %253 = vmatprep.subr.mxu0 0.0
    %254 = vmatpush1.msra.mxu0 %v61
    %255 = vmatprep.subr.mxu0 0.0
    %256 = vmatpush1.msra.mxu0 %v60
    %257 = vmatprep.subr.mxu0 0.0
    %258 = vmatpush1.msra.mxu0 %v59
    %259 = vmatprep.subr.mxu0 0.0
    %260 = vmatpush1.msra.mxu0 %v58
    %261 = vmatprep.subr.mxu0 0.0
    %262 = vmatpush2.msra.mxu0 0.0
    %263 = vmatprep.subr.mxu0 0.0
    %264 = vmatpush2.msra.mxu0 0.0
    %265 = vmatprep.subr.mxu0 0.0
    %266 = vmatpush2.msra.mxu0 0.0
    %267 = vmatprep.subr.mxu0 0.0
    %268 = vmatpush2.msra.mxu0 0.0
    %269 = vmatprep.subr.mxu0 0.0
    %270 = vmatpush2.msra.mxu0 0.0
    %271 = vmatprep.subr.mxu0 0.0
    %272 = vmatpush2.msra.mxu0 0.0
    %273 = vmatprep.subr.mxu0 0.0
    %274 = vmatpush2.msra.mxu0 0.0
    %275 = vmatprep.subr.mxu0 0.0
    %276 = vmatpush2.msra.mxu0 0.0
    %277 = vmatprep.subr.mxu0 0.0
    %278 = vmatpush2.msra.mxu0 0.0
    %279 = vmatprep.subr.mxu0 0.0
    %280 = vmatpush2.msra.mxu0 0.0
    %281 = vmatprep.subr.mxu0 0.0
    %282 = vmatpush2.msra.mxu0 0.0
    %283 = vmatprep.subr.mxu0 0.0
    %284 = vmatpush2.msra.mxu0 0.0
    %285 = vmatprep.subr.mxu0 0.0
    %286 = vmatpush2.msra.mxu0 0.0
    %287 = vmatprep.subr.mxu0 0.0
    %288 = vmatpush2.msra.mxu0 0.0
    %289 = vmatprep.subr.mxu0 0.0
    %290 = vmatpush2.msra.mxu0 0.0
    %291 = vmatprep.subr.mxu0 0.0
    %292 = vmatpush2.msra.mxu0 0.0
    %293 = vmatprep.mubr.f32.mxu0 0.0
    %294 = vmatmul.mubr.f32.gmra.mxu0 %v224
    %v295 = vpop.f32.mrf.mxu0
    %v296 = vadd.f32 %v228, %v295
    %v297 = vpop.f32.mrf.mxu0
    %298 = vdwg.mxu0
    %v299 = vrot.slane %v296, 4
    %v300 = vmax.f32 %v296, %v299
    %v301 = vrot.slane %v300, 2
    %v302 = vmax.f32 %v300, %v301
    %v303 = vrot.slane %v302, 1
    %v304 = vmax.f32 %v302, %v303
    %v305 = vsub.f32 %v296, %v304
    %v306 = vmul.f32 %v305, 1.442695
    %v307 = vpow.pop %v306
    %v308 = vrot.slane %v307, 4
    %v309 = vadd.f32 %v307, %v308
    %v310 = vrot.slane %v309, 2
    %v311 = vadd.f32 %v309, %v310
    %v312 = vrot.slane %v311, 1
    %v313 = vadd.f32 %v311, %v312
    %v314 = vlog2.pop %v313
    %v315 = vmul.f32 %v314, 0.6931472
    %v316 = vsub.f32 %v305, %v315
    %317 = vst [vmem:[#allocation5] sm:$0xff] %v316
    // Predicated region
    $region10: #{tpu_custom_call.1} parent=1 // pred_check
      _
    $region11: #{tpu_custom_call.1} parent=1 // pred_check_branch
      %319 = sbr.rel (0) target = $region13
    $region12: #{tpu_custom_call.1} parent=1 // pred_region
      %s321 = ssub.s32 128, 128
      %322 = vsyncadd [#allocation4], %s321
      %s324 = sshll.u32 [#allocation5], 4
      %s325 = int_to_ptr.vmem [resolvable:$true] %s324
      %327 = dma.vmem_to_hbm [thread:$0]  %s325, 128, %s1, [#allocation4]
    $region13: #{tpu_custom_call.1} parent=1 // pred_fallthru
      _
    // Predicated region
    $region14: #{tpu_custom_call.1} parent=1 // pred_check
      _
    $region15: #{tpu_custom_call.1} parent=1 // pred_check_branch
      %329 = sbr.rel (0) target = $region17
    $region16: #{tpu_custom_call.1} parent=1 // pred_region
      %330 = dma.done [#allocation4], 128
    $region17: #{tpu_custom_call.1} parent=1 // pred_fallthru
      _
    %331 = vsyncpa [#allocation3], 1
    %332 = vsyncpa [#allocation4], 1

</llo_original>
